<compile_context>
chip_gen: v6e
topology: v6e:2x2x1
jax: 0.10.0
libtpu: 0.0.40
codegen_flags: <defaults>
</compile_context>

<pallas_src>
import jax
import jax.numpy as jnp
from jax.experimental import pallas as pl
from jax.experimental.pallas import tpu as pltpu


def _round_up(x: int, m: int) -> int:
    return ((x + m - 1) // m) * m


def _pick_epilogue_dtype():
    """bf16 epilogues only where the VPU is bf16-native (v6e / v7x); f32 otherwise (v5e...)."""
    try:
        kind = jax.devices()[0].device_kind.lower()
    except Exception:
        return jnp.float32
    return jnp.bfloat16 if ("v6" in kind or "v7" in kind) else jnp.float32


def _pick_bm(B: int, bm_max: int = 2048) -> int:
    """Batch tile: as big as possible (amortize ~0.35us/step pipeline overhead), but with
    >= 2 grid steps for large batches so v7x's two TensorCores both get work."""
    Bp = _round_up(B, 8)
    if Bp <= 8:
        return B                      # single full-extent block (legal: equals array dim)
    if Bp > 512:
        bm = _round_up(pl.cdiv(Bp, 2), 8)   # at least 2 steps for megacore sharding
    else:
        bm = Bp
    return min(bm, bm_max)


def qnet_kernel(x_ref, w1_ref, b1_ref, w2_ref, b2_ref, w3_ref, b3_ref, out_ref):
    cd = w1_ref.dtype        # MXU compute dtype (bf16)
    ed = b1_ref.dtype        # epilogue dtype (bf16 on v6e/v7x, f32 on v5e)

    x = x_ref[...].astype(cd)                                   # f32 -> bf16 inside the kernel

    # fc1 + relu  (bf16 MXU, f32 accumulate, epilogue in ed)
    h1 = jnp.dot(x, w1_ref[...], preferred_element_type=jnp.float32).astype(ed) + b1_ref[...]
    h1 = jnp.maximum(h1, 0.0).astype(cd)

    # fc2 + relu
    h2 = jnp.dot(h1, w2_ref[...], preferred_element_type=jnp.float32).astype(ed) + b2_ref[...]
    h2 = jnp.maximum(h2, 0.0).astype(cd)

    # fc3 (no activation) -> narrow f32 store (masked vst, tiny DMA)
    out = jnp.dot(h2, w3_ref[...], preferred_element_type=jnp.float32) + b3_ref[...]
    out_ref[...] = out.astype(out_ref.dtype)


def prepare_params(params, *, compute_dtype=jnp.bfloat16, epilogue_dtype=None):
    """One-time (per parameter update, outside the RL hot loop) cast of weights/biases.
    Weights keep their natural (in, out) layout -- the intermediates never cross a BlockSpec,
    so no lane padding is needed, and the resident VMEM footprint stays ~13 KiB."""
    if epilogue_dtype is None:
        epilogue_dtype = _pick_epilogue_dtype()
    return {
        "w1": params["w1"].astype(compute_dtype),
        "w2": params["w2"].astype(compute_dtype),
        "w3": params["w3"].astype(compute_dtype),
        "b1": params["b1"].astype(epilogue_dtype),
        "b2": params["b2"].astype(epilogue_dtype),
        "b3": params["b3"].astype(jnp.float32),   # final Q-values in f32
    }


def qnetwork_forward(state, prepared, *, bm=None):
    """state: (B, state_size) f32.  prepared: output of prepare_params()."""
    B, S = state.shape
    H1 = prepared["w1"].shape[1]          # 32
    H2 = prepared["w2"].shape[1]          # 64
    A = prepared["w3"].shape[1]           # action_size

    if bm is None:
        bm = _pick_bm(B)
    grid = (pl.cdiv(B, bm),)

    const = lambda i: (0, 0)              # weights / biases resident across all grid steps

    param_bytes = sum(int(a.size) * a.dtype.itemsize for a in prepared.values())
    cost = pl.CostEstimate(
        flops=2 * B * (S * H1 + H1 * H2 + H2 * A),
        transcendentals=0,
        bytes_accessed=B * S * 4 + param_bytes + B * A * 4,
    )

    return pl.pallas_call(
        qnet_kernel,
        out_shape=jax.ShapeDtypeStruct((B, A), jnp.float32),
        grid_spec=pl.GridSpec(
            grid=grid,
            in_specs=[
                pl.BlockSpec((bm, S), lambda i: (i, 0)),         # x batch tile (f32)
                pl.BlockSpec(prepared["w1"].shape, const),       # (S, 32)   bf16
                pl.BlockSpec(prepared["b1"].shape, const),       # (1, 32)
                pl.BlockSpec(prepared["w2"].shape, const),       # (32, 64)  bf16
                pl.BlockSpec(prepared["b2"].shape, const),       # (1, 64)
                pl.BlockSpec(prepared["w3"].shape, const),       # (64, A)   bf16
                pl.BlockSpec(prepared["b3"].shape, const),       # (1, A)    f32
            ],
            out_specs=pl.BlockSpec((bm, A), lambda i: (i, 0)),   # narrow f32 output
        ),
        compiler_params=pltpu.CompilerParams(
            dimension_semantics=("parallel",)),
        cost_estimate=cost,
    )(state, prepared["w1"], prepared["b1"], prepared["w2"], prepared["b2"],
      prepared["w3"], prepared["b3"])


def init_params(key, state_size, action_size):
    """Deterministic synthetic init with the same layer shapes as the PyTorch module.
    nn.Linear stores W as (out, in); we keep the transposed (in, out) layout for the kernel."""
    k1, k2, k3, k4, k5, k6 = jax.random.split(key, 6)

    def uniform_like(k, fan_in, shape):
        bound = 1.0 / jnp.sqrt(jnp.float32(fan_in))
        return jax.random.uniform(k, shape, jnp.float32, -bound, bound)

    return {
        "w1": uniform_like(k1, state_size, (state_size, 32)),
        "b1": uniform_like(k2, state_size, (1, 32)),
        "w2": uniform_like(k3, 32, (32, 64)),
        "b2": uniform_like(k4, 32, (1, 64)),
        "w3": uniform_like(k5, 64, (64, action_size)),
        "b3": uniform_like(k6, 64, (1, action_size)),
    }


def qnetwork_ref(state, params, *, compute_dtype=jnp.float32, epilogue_dtype=jnp.float32):
    """Pure-JAX reference.  With (f32, f32) it is exactly the PyTorch module's math;
    with (bf16, <ed>) it mirrors the kernel's precision step-for-step."""
    cd, ed = compute_dtype, epilogue_dtype
    x = state.astype(cd)
    h1 = jnp.dot(x, params["w1"].astype(cd), preferred_element_type=jnp.float32)
    h1 = jnp.maximum(h1.astype(ed) + params["b1"].astype(ed), 0.0).astype(cd)
    h2 = jnp.dot(h1, params["w2"].astype(cd), preferred_element_type=jnp.float32)
    h2 = jnp.maximum(h2.astype(ed) + params["b2"].astype(ed), 0.0).astype(cd)
    out = jnp.dot(h2, params["w3"].astype(cd), preferred_element_type=jnp.float32)
    return out + params["b3"].astype(jnp.float32)


if __name__ == "__main__":
    key = jax.random.PRNGKey(0)
    kp, kx, kx2 = jax.random.split(key, 3)

    batch = 8
    state_size = 8      # LunarLander-style small observation vector
    action_size = 4

    params = init_params(kp, state_size, action_size)
    ed = _pick_epilogue_dtype()
    prepared = prepare_params(params, compute_dtype=jnp.bfloat16, epilogue_dtype=ed)

    state = jax.random.normal(kx, (batch, state_size), jnp.float32)
    q_values = jax.block_until_ready(qnetwork_forward(state, prepared))
    assert q_values.shape == (batch, action_size)

    ref_match = qnetwork_ref(state, params, compute_dtype=jnp.bfloat16, epilogue_dtype=ed)
    ref_f32 = qnetwork_ref(state, params)   # exact PyTorch-module semantics (f32)
    assert jnp.allclose(q_values, ref_match, atol=2e-3, rtol=2e-3)
    assert jnp.allclose(q_values, ref_f32, atol=5e-2, rtol=5e-2)

    # Ragged batch + multi-step grid: exercises the partial trailing block (masked OOB
    # writes, no wrapper-side batch pad/slice) and the "parallel" batch axis with grid=(2,).
    batch2 = 200
    state2 = jax.random.normal(kx2, (batch2, state_size), jnp.float32)
    q2 = jax.block_until_ready(qnetwork_forward(state2, prepared, bm=128))
    assert q2.shape == (batch2, action_size)
    assert jnp.allclose(
        q2,
        qnetwork_ref(state2, params, compute_dtype=jnp.bfloat16, epilogue_dtype=ed),
        atol=2e-3, rtol=2e-3)

    print("KERNEL_OK")
</pallas_src>

<mosaic_0001>
module attributes {stable_mosaic.version = 11 : i64} {
  func.func @qnet_kernel(%arg0: i32, %arg1: memref<8x8xf32, #tpu.memory_space<vmem>>, %arg2: memref<8x32xbf16, #tpu.memory_space<vmem>>, %arg3: memref<1x32xf32, #tpu.memory_space<vmem>>, %arg4: memref<32x64xbf16, #tpu.memory_space<vmem>>, %arg5: memref<1x64xf32, #tpu.memory_space<vmem>>, %arg6: memref<64x4xbf16, #tpu.memory_space<vmem>>, %arg7: memref<1x4xf32, #tpu.memory_space<vmem>>, %arg8: memref<8x4xf32, #tpu.memory_space<vmem>>) attributes {dimension_semantics = [#tpu.dimension_semantics<parallel>], iteration_bounds = array<i64: 1>, scalar_prefetch = 0 : i64, scratch_operands = 0 : i64, tpu.core_type = #tpu.core_type<tc>, window_params = [{transform_indices = @transform_0, window_bounds = array<i64: 8, 8>}, {pipeline_mode = #tpu.pipeline_mode<synchronous>, transform_indices = @transform_1, window_bounds = array<i64: 8, 32>}, {pipeline_mode = #tpu.pipeline_mode<synchronous>, transform_indices = @transform_2, window_bounds = array<i64: 1, 32>}, {pipeline_mode = #tpu.pipeline_mode<synchronous>, transform_indices = @transform_3, window_bounds = array<i64: 32, 64>}, {pipeline_mode = #tpu.pipeline_mode<synchronous>, transform_indices = @transform_4, window_bounds = array<i64: 1, 64>}, {pipeline_mode = #tpu.pipeline_mode<synchronous>, transform_indices = @transform_5, window_bounds = array<i64: 64, 4>}, {pipeline_mode = #tpu.pipeline_mode<synchronous>, transform_indices = @transform_6, window_bounds = array<i64: 1, 4>}, {transform_indices = @transform_7, window_bounds = array<i64: 8, 4>}]} {
    %c0 = arith.constant 0 : index
    %c0_0 = arith.constant 0 : index
    %0 = vector.load %arg1[%c0, %c0_0] : memref<8x8xf32, #tpu.memory_space<vmem>>, vector<8x8xf32>
    %1 = arith.truncf %0 : vector<8x8xf32> to vector<8x8xbf16>
    %c0_1 = arith.constant 0 : index
    %c0_2 = arith.constant 0 : index
    %2 = vector.load %arg2[%c0_1, %c0_2] : memref<8x32xbf16, #tpu.memory_space<vmem>>, vector<8x32xbf16>
    %cst = arith.constant dense<0.000000e+00> : vector<8x32xf32>
    %3 = tpu.matmul %1, %2, %cst {dimension_numbers = #tpu.dot_dimension_numbers<[1], [0], [0], [1], [0, 0, 1, 1], [], []>} : vector<8x8xbf16>, vector<8x32xbf16>, vector<8x32xf32> -> vector<8x32xf32>
    %c0_3 = arith.constant 0 : index
    %c0_4 = arith.constant 0 : index
    %4 = vector.load %arg3[%c0_3, %c0_4] : memref<1x32xf32, #tpu.memory_space<vmem>>, vector<1x32xf32>
    %5 = vector.broadcast %4 : vector<1x32xf32> to vector<8x32xf32>
    %6 = arith.addf %3, %5 : vector<8x32xf32>
    %cst_5 = arith.constant 0.000000e+00 : f32
    %7 = vector.broadcast %cst_5 : f32 to vector<8x32xf32>
    %8 = arith.maximumf %6, %7 : vector<8x32xf32>
    %9 = arith.truncf %8 : vector<8x32xf32> to vector<8x32xbf16>
    %c0_6 = arith.constant 0 : index
    %c0_7 = arith.constant 0 : index
    %10 = vector.load %arg4[%c0_6, %c0_7] : memref<32x64xbf16, #tpu.memory_space<vmem>>, vector<32x64xbf16>
    %cst_8 = arith.constant dense<0.000000e+00> : vector<8x64xf32>
    %11 = tpu.matmul %9, %10, %cst_8 {dimension_numbers = #tpu.dot_dimension_numbers<[1], [0], [0], [1], [0, 0, 1, 1], [], []>} : vector<8x32xbf16>, vector<32x64xbf16>, vector<8x64xf32> -> vector<8x64xf32>
    %c0_9 = arith.constant 0 : index
    %c0_10 = arith.constant 0 : index
    %12 = vector.load %arg5[%c0_9, %c0_10] : memref<1x64xf32, #tpu.memory_space<vmem>>, vector<1x64xf32>
    %13 = vector.broadcast %12 : vector<1x64xf32> to vector<8x64xf32>
    %14 = arith.addf %11, %13 : vector<8x64xf32>
    %cst_11 = arith.constant 0.000000e+00 : f32
    %15 = vector.broadcast %cst_11 : f32 to vector<8x64xf32>
    %16 = arith.maximumf %14, %15 : vector<8x64xf32>
    %17 = arith.truncf %16 : vector<8x64xf32> to vector<8x64xbf16>
    %c0_12 = arith.constant 0 : index
    %c0_13 = arith.constant 0 : index
    %18 = vector.load %arg6[%c0_12, %c0_13] : memref<64x4xbf16, #tpu.memory_space<vmem>>, vector<64x4xbf16>
    %cst_14 = arith.constant dense<0.000000e+00> : vector<8x4xf32>
    %19 = tpu.matmul %17, %18, %cst_14 {dimension_numbers = #tpu.dot_dimension_numbers<[1], [0], [0], [1], [0, 0, 1, 1], [], []>} : vector<8x64xbf16>, vector<64x4xbf16>, vector<8x4xf32> -> vector<8x4xf32>
    %c0_15 = arith.constant 0 : index
    %c0_16 = arith.constant 0 : index
    %20 = vector.load %arg7[%c0_15, %c0_16] : memref<1x4xf32, #tpu.memory_space<vmem>>, vector<1x4xf32>
    %21 = vector.broadcast %20 : vector<1x4xf32> to vector<8x4xf32>
    %22 = arith.addf %19, %21 : vector<8x4xf32>
    %c0_17 = arith.constant 0 : index
    %c0_18 = arith.constant 0 : index
    %23 = vector.load %arg8[%c0_17, %c0_18] : memref<8x4xf32, #tpu.memory_space<vmem>>, vector<8x4xf32>
    tpu.vector_store %arg8[%c0_17, %c0_18], %22 {strides = array<i32>} : memref<8x4xf32, #tpu.memory_space<vmem>>, vector<8x4xf32>,
    return
  }
  func.func @transform_0(%arg0: i32) -> (i32, i32) {
    %c0_i32 = arith.constant 0 : i32
    %c0_i32_0 = arith.constant 0 : i32
    return %arg0, %c0_i32 : i32, i32
  }
  func.func @transform_1(%arg0: i32) -> (i32, i32) {
    %c0_i32 = arith.constant 0 : i32
    %c0_i32_0 = arith.constant 0 : i32
    %c0_i32_1 = arith.constant 0 : i32
    return %c0_i32, %c0_i32_0 : i32, i32
  }
  func.func @transform_2(%arg0: i32) -> (i32, i32) {
    %c0_i32 = arith.constant 0 : i32
    %c0_i32_0 = arith.constant 0 : i32
    %c0_i32_1 = arith.constant 0 : i32
    return %c0_i32, %c0_i32_0 : i32, i32
  }
  func.func @transform_3(%arg0: i32) -> (i32, i32) {
    %c0_i32 = arith.constant 0 : i32
    %c0_i32_0 = arith.constant 0 : i32
    %c0_i32_1 = arith.constant 0 : i32
    return %c0_i32, %c0_i32_0 : i32, i32
  }
  func.func @transform_4(%arg0: i32) -> (i32, i32) {
    %c0_i32 = arith.constant 0 : i32
    %c0_i32_0 = arith.constant 0 : i32
    %c0_i32_1 = arith.constant 0 : i32
    return %c0_i32, %c0_i32_0 : i32, i32
  }
  func.func @transform_5(%arg0: i32) -> (i32, i32) {
    %c0_i32 = arith.constant 0 : i32
    %c0_i32_0 = arith.constant 0 : i32
    %c0_i32_1 = arith.constant 0 : i32
    return %c0_i32, %c0_i32_0 : i32, i32
  }
  func.func @transform_6(%arg0: i32) -> (i32, i32) {
    %c0_i32 = arith.constant 0 : i32
    %c0_i32_0 = arith.constant 0 : i32
    %c0_i32_1 = arith.constant 0 : i32
    return %c0_i32, %c0_i32_0 : i32, i32
  }
  func.func @transform_7(%arg0: i32) -> (i32, i32) {
    %c0_i32 = arith.constant 0 : i32
    %c0_i32_0 = arith.constant 0 : i32
    return %arg0, %c0_i32 : i32, i32
  }
}

</mosaic_0001>

<llo_original>
// kernel: tpu_custom_call.1
$region0: #{tpu_custom_call.1}
  #allocation0 [shape = 'u32[]', space=smem, size = 0x4, offset = 0x4, fixed_abs, tag = 'smem constant byte address 0x4 - core index']
  #allocation1 [shape = 'u32[144,128]{1,0:T(1,128)}', space=vmem, size = 0x12000, scoped, tag = 'internal scratch']
  %s0 = inlined_call_operand.vmem [shape: f32[8,8], index: 0, kind: input, shape index: {}]
  %s1 = inlined_call_operand.vmem [shape: bf16[8,32], index: 1, kind: input, shape index: {}]
  %s2 = inlined_call_operand.vmem [shape: f32[1,32], index: 2, kind: input, shape index: {}]
  %s3 = inlined_call_operand.vmem [shape: bf16[32,64], index: 3, kind: input, shape index: {}]
  %s4 = inlined_call_operand.vmem [shape: f32[1,64], index: 4, kind: input, shape index: {}]
  %s5 = inlined_call_operand.vmem [shape: bf16[64,4], index: 5, kind: input, shape index: {}]
  %s6 = inlined_call_operand.vmem [shape: f32[1,4], index: 6, kind: input, shape index: {}]
  %s7 = inlined_call_operand.vmem [shape: f32[8,4], index: 7, kind: output, shape index: {}]
  %s8 = sld [smem:[#allocation0]]
  $region38: #{tpu_custom_call.1} parent=0
    _
  %s10 = ssub.s32 1, %s8
  %s11 = scalar_select 0, %s10, %s8
  // Predicated region
  $region2: #{tpu_custom_call.1} parent=0 // pred_check
    _
  $region3: #{tpu_custom_call.1} parent=0 // pred_check_branch
    %13 = sbr.rel (0) target = $region5
  $region4: #{tpu_custom_call.1} parent=0 // pred_region
    _
  $region5: #{tpu_custom_call.1} parent=0 // pred_fallthru
    _
  // Predicated region
  $region6: #{tpu_custom_call.1} parent=0 // pred_check
    _
  $region7: #{tpu_custom_call.1} parent=0 // pred_check_branch
    %15 = sbr.rel (0) target = $region9
  $region8: #{tpu_custom_call.1} parent=0 // pred_region
    _
  $region9: #{tpu_custom_call.1} parent=0 // pred_fallthru
    _
  // Predicated region
  $region10: #{tpu_custom_call.1} parent=0 // pred_check
    _
  $region11: #{tpu_custom_call.1} parent=0 // pred_check_branch
    %17 = sbr.rel (0) target = $region13
  $region12: #{tpu_custom_call.1} parent=0 // pred_region
    _
  $region13: #{tpu_custom_call.1} parent=0 // pred_fallthru
    _
  // Predicated region
  $region14: #{tpu_custom_call.1} parent=0 // pred_check
    _
  $region15: #{tpu_custom_call.1} parent=0 // pred_check_branch
    %19 = sbr.rel (0) target = $region17
  $region16: #{tpu_custom_call.1} parent=0 // pred_region
    _
  $region17: #{tpu_custom_call.1} parent=0 // pred_fallthru
    _
  // Predicated region
  $region18: #{tpu_custom_call.1} parent=0 // pred_check
    _
  $region19: #{tpu_custom_call.1} parent=0 // pred_check_branch
    %21 = sbr.rel (0) target = $region21
  $region20: #{tpu_custom_call.1} parent=0 // pred_region
    _
  $region21: #{tpu_custom_call.1} parent=0 // pred_fallthru
    _
  // Predicated region
  $region22: #{tpu_custom_call.1} parent=0 // pred_check
    _
  $region23: #{tpu_custom_call.1} parent=0 // pred_check_branch
    %23 = sbr.rel (0) target = $region25
  $region24: #{tpu_custom_call.1} parent=0 // pred_region
    _
  $region25: #{tpu_custom_call.1} parent=0 // pred_fallthru
    _
  // Predicated region
  $region26: #{tpu_custom_call.1} parent=0 // pred_check
    _
  $region27: #{tpu_custom_call.1} parent=0 // pred_check_branch
    %25 = sbr.rel (0) target = $region29
  $region28: #{tpu_custom_call.1} parent=0 // pred_region
    _
  $region29: #{tpu_custom_call.1} parent=0 // pred_fallthru
    _
  %v27 = vld [vmem:[%s0] sm:$0xff]
  %v28 = vpack.c.bf16 %v27, %v27
  %v29 = vld [vmem:[%s1] sm:$0xf]
  %v30 = vld [vmem:[%s2] sm:$0x1]
  %v32 = vlaneseq
  %v33 = vshrl.u32 %v32, 7
  %v34 = vsub.s32 0, %v33
  %v35 = vrot.slane %v30, %v34
  %vm37 = vcmask 64512
  %v39 = vsel %vm37, %v28, 0
  %vm41 = vcmask 1043456
  %v43 = vsel %vm41, %v29, 0
  %45 = vmatprep.subr.bf16.mxu0 0
  %46 = vmatpush1.bf16.msra.mxu0 0
  %47 = vmatprep.subr.bf16.mxu0 0
  %48 = vmatpush1.bf16.msra.mxu0 0
  %49 = vmatprep.subr.bf16.mxu0 0
  %50 = vmatpush1.bf16.msra.mxu0 0
  %51 = vmatprep.subr.bf16.mxu0 0
  %52 = vmatpush1.bf16.msra.mxu0 0
  %53 = vmatprep.subr.bf16.mxu0 0
  %54 = vmatpush1.bf16.msra.mxu0 0
  %55 = vmatprep.subr.bf16.mxu0 0
  %56 = vmatpush1.bf16.msra.mxu0 0
  %57 = vmatprep.subr.bf16.mxu0 0
  %58 = vmatpush1.bf16.msra.mxu0 0
  %59 = vmatprep.subr.bf16.mxu0 0
  %60 = vmatpush1.bf16.msra.mxu0 %v43
  %61 = vmatprep.subr.bf16.mxu0 0
  %62 = vmatpush2.bf16.msra.mxu0 0
  %63 = vmatprep.subr.bf16.mxu0 0
  %64 = vmatpush2.bf16.msra.mxu0 0
  %65 = vmatprep.subr.bf16.mxu0 0
  %66 = vmatpush2.bf16.msra.mxu0 0
  %67 = vmatprep.subr.bf16.mxu0 0
  %68 = vmatpush2.bf16.msra.mxu0 0
  %69 = vmatprep.subr.bf16.mxu0 0
  %70 = vmatpush2.bf16.msra.mxu0 0
  %71 = vmatprep.subr.bf16.mxu0 0
  %72 = vmatpush2.bf16.msra.mxu0 0
  %73 = vmatprep.subr.bf16.mxu0 0
  %74 = vmatpush2.bf16.msra.mxu0 0
  %75 = vmatprep.subr.bf16.mxu0 0
  %76 = vmatpush2.bf16.msra.mxu0 0
  %77 = vmatprep.mubr.bf16.mxu0 0
  %78 = vmatmul.mubr.bf16.gmra.mxu0 %v39
  %v79 = vpop.f32.mrf.mxu0
  %v80 = vadd.f32 %v35, %v79
  %v81 = vpop.f32.mrf.mxu0
  %v82 = vpop.f32.mrf.mxu0
  %v83 = vpop.f32.mrf.mxu0
  %84 = vdwg.mxu0
  %v85 = vmax.f32 %v80, 0.0
  %v86 = vpack.c.bf16 %v85, %v85
  %v87 = vld [vmem:[%s3] sm:$0xf]
  %v88 = vld [vmem:[%s3 + $0x4] sm:$0xf]
  %v89 = vld [vmem:[%s3 + $0x8] sm:$0xf]
  %v90 = vld [vmem:[%s3 + $0xc] sm:$0xf]
  %v91 = vld [vmem:[%s4] sm:$0x1]
  %v93 = vlaneseq
  %v94 = vshrl.u32 %v93, 7
  %v95 = vsub.s32 0, %v94
  %v96 = vrot.slane %v91, %v95
  %v102 = vunpack.c.l.b16 %v87
  %v103 = vunpack.c.l.b16 %v88
  %v104 = vunpack.c.l.b16 %v89
  %v105 = vunpack.c.l.b16 %v90
  %v106 = vpack.c.b16 %v103, %v102
  %v107 = vpack.c.b16 %v105, %v104
  %vm110 = vcmask 261120
  %v112 = vsel %vm110, %v86, 0
  %114 = vmatprep.subr.bf16.mxu0 0
  %115 = vmatpush1.bf16.msra.mxu0 0
  %116 = vmatprep.subr.bf16.mxu0 0
  %117 = vmatpush1.bf16.msra.mxu0 0
  %118 = vmatprep.subr.bf16.mxu0 0
  %119 = vmatpush1.bf16.msra.mxu0 0
  %120 = vmatprep.subr.bf16.mxu0 0
  %121 = vmatpush1.bf16.msra.mxu0 0
  %122 = vmatprep.subr.bf16.mxu0 0
  %123 = vmatpush1.bf16.msra.mxu0 0
  %124 = vmatprep.subr.bf16.mxu0 0
  %125 = vmatpush1.bf16.msra.mxu0 0
  %126 = vmatprep.subr.bf16.mxu0 0
  %127 = vmatpush1.bf16.msra.mxu0 %v107
  %128 = vmatprep.subr.bf16.mxu0 0
  %129 = vmatpush1.bf16.msra.mxu0 %v106
  %130 = vmatprep.subr.bf16.mxu0 0
  %131 = vmatpush2.bf16.msra.mxu0 0
  %132 = vmatprep.subr.bf16.mxu0 0
  %133 = vmatpush2.bf16.msra.mxu0 0
  %134 = vmatprep.subr.bf16.mxu0 0
  %135 = vmatpush2.bf16.msra.mxu0 0
  %136 = vmatprep.subr.bf16.mxu0 0
  %137 = vmatpush2.bf16.msra.mxu0 0
  %138 = vmatprep.subr.bf16.mxu0 0
  %139 = vmatpush2.bf16.msra.mxu0 0
  %140 = vmatprep.subr.bf16.mxu0 0
  %141 = vmatpush2.bf16.msra.mxu0 0
  %142 = vmatprep.subr.bf16.mxu0 0
  %143 = vmatpush2.bf16.msra.mxu0 0
  %144 = vmatprep.subr.bf16.mxu0 0
  %145 = vmatpush2.bf16.msra.mxu0 0
  %146 = vmatprep.mubr.bf16.mxu0 0
  %147 = vmatmul.mubr.bf16.gmra.mxu0 %v112
  %v148 = vpop.f32.mrf.mxu0
  %v149 = vadd.f32 %v96, %v148
  %v150 = vpop.f32.mrf.mxu0
  %v151 = vpop.f32.mrf.mxu0
  %v152 = vpop.f32.mrf.mxu0
  %153 = vdwg.mxu0
  %v154 = vmax.f32 %v149, 0.0
  %v155 = vpack.c.bf16 %v154, %v154
  %v156 = vld [vmem:[%s5] sm:$0xf]
  %v157 = vld [vmem:[%s5 + $0x4] sm:$0xf]
  %v158 = vld [vmem:[%s5 + $0x8] sm:$0xf]
  %v159 = vld [vmem:[%s5 + $0xc] sm:$0xf]
  %v160 = vld [vmem:[%s5 + $0x10] sm:$0xf]
  %v161 = vld [vmem:[%s5 + $0x14] sm:$0xf]
  %v162 = vld [vmem:[%s5 + $0x18] sm:$0xf]
  %v163 = vld [vmem:[%s5 + $0x1c] sm:$0xf]
  %v164 = vld [vmem:[%s6] sm:$0x1]
  %v166 = vlaneseq
  %v167 = vshrl.u32 %v166, 7
  %v168 = vsub.s32 0, %v167
  %v169 = vrot.slane %v164, %v168
  %v179 = vunpack.c.l.b16 %v156
  %v180 = vunpack.c.l.b16 %v157
  %v181 = vunpack.c.l.b16 %v158
  %v182 = vunpack.c.l.b16 %v159
  %v183 = vunpack.c.l.b16 %v160
  %v184 = vunpack.c.l.b16 %v161
  %v185 = vunpack.c.l.b16 %v162
  %v186 = vunpack.c.l.b16 %v163
  %v187 = vpack.c.b16 %v180, %v179
  %v188 = vpack.c.b16 %v182, %v181
  %v189 = vpack.c.b16 %v184, %v183
  %v190 = vpack.c.b16 %v186, %v185
  %vm195 = vcmask 523264
  %v197 = vsel %vm195, %v155, 0
  %199 = vmatprep.subr.bf16.mxu0 0
  %200 = vmatpush1.bf16.msra.mxu0 0
  %201 = vmatprep.subr.bf16.mxu0 0
  %202 = vmatpush1.bf16.msra.mxu0 0
  %203 = vmatprep.subr.bf16.mxu0 0
  %204 = vmatpush1.bf16.msra.mxu0 0
  %205 = vmatprep.subr.bf16.mxu0 0
  %206 = vmatpush1.bf16.msra.mxu0 0
  %207 = vmatprep.subr.bf16.mxu0 0
  %208 = vmatpush1.bf16.msra.mxu0 %v190
  %209 = vmatprep.subr.bf16.mxu0 0
  %210 = vmatpush1.bf16.msra.mxu0 %v189
  %211 = vmatprep.subr.bf16.mxu0 0
  %212 = vmatpush1.bf16.msra.mxu0 %v188
  %213 = vmatprep.subr.bf16.mxu0 0
  %214 = vmatpush1.bf16.msra.mxu0 %v187
  %215 = vmatprep.subr.bf16.mxu0 0
  %216 = vmatpush2.bf16.msra.mxu0 0
  %217 = vmatprep.subr.bf16.mxu0 0
  %218 = vmatpush2.bf16.msra.mxu0 0
  %219 = vmatprep.subr.bf16.mxu0 0
  %220 = vmatpush2.bf16.msra.mxu0 0
  %221 = vmatprep.subr.bf16.mxu0 0
  %222 = vmatpush2.bf16.msra.mxu0 0
  %223 = vmatprep.subr.bf16.mxu0 0
  %224 = vmatpush2.bf16.msra.mxu0 0
  %225 = vmatprep.subr.bf16.mxu0 0
  %226 = vmatpush2.bf16.msra.mxu0 0
  %227 = vmatprep.subr.bf16.mxu0 0
  %228 = vmatpush2.bf16.msra.mxu0 0
  %229 = vmatprep.subr.bf16.mxu0 0
  %230 = vmatpush2.bf16.msra.mxu0 0
  %231 = vmatprep.mubr.bf16.mxu0 0
  %232 = vmatmul.mubr.bf16.gmra.mxu0 %v197
  %v233 = vpop.f32.mrf.mxu0
  %v234 = vadd.f32 %v169, %v233
  %v235 = vpop.f32.mrf.mxu0
  %v236 = vpop.f32.mrf.mxu0
  %v237 = vpop.f32.mrf.mxu0
  %238 = vdwg.mxu0
  %vm239 = vcmask 31744
  %240 = vst.msk [vmem:[%s7] sm:$0xff] %vm239, %v234
  // Predicated region
  $region30: #{tpu_custom_call.1} parent=0 // pred_check
    _
  $region31: #{tpu_custom_call.1} parent=0 // pred_check_branch
    %242 = sbr.rel (0) target = $region33
  $region32: #{tpu_custom_call.1} parent=0 // pred_region
    _
  $region33: #{tpu_custom_call.1} parent=0 // pred_fallthru
    _
  // Predicated region
  $region34: #{tpu_custom_call.1} parent=0 // pred_check
    _
  $region35: #{tpu_custom_call.1} parent=0 // pred_check_branch
    %244 = sbr.rel (0) target = $region37
  $region36: #{tpu_custom_call.1} parent=0 // pred_region
    _
  $region37: #{tpu_custom_call.1} parent=0 // pred_fallthru
    _

</llo_original>
